<compile_context>
chip_gen: v7x
topology: tpu7x:2x2x1
jax: 0.10.0
libtpu: 0.0.40
codegen_flags: <defaults>
</compile_context>

<pallas_src>
import functools
import math

import jax
import jax.numpy as jnp
from jax import lax
from jax.experimental import pallas as pl
from jax.experimental.pallas import tpu as pltpu


def _round_up(x, m):
    return ((x + m - 1) // m) * m


# ----------------------- fused GEMM + bias/BN-shift + ReLU ---------------------

def _fused_gemm_bn_relu_kernel(x_ref, w_ref, shift_ref, o_ref):
    # x: (tm, K) bf16, w: (K, Np) bf16 (BN scale pre-folded), shift: (1, Np) f32.
    acc = jnp.dot(x_ref[...], w_ref[...], preferred_element_type=jnp.float32)
    acc = acc + shift_ref[...]
    o_ref[...] = jnp.maximum(acc, 0.0).astype(o_ref.dtype)


def fused_conv_gemm(patches, wmat, shift, n_valid, out_dtype=jnp.float32,
                    tm_max=1024):
    """relu(patches @ wmat + shift)[:, :n_valid].

    wmat: (K, Np) bf16 with Np % 128 == 0 (lane-dense output stores) and the
    eval-mode BN scale already folded in.  shift: (1, Np) f32 broadcast over
    rows.  K is kept whole per block (kh*kw*Cin is small for 3x3 convs); for
    very large K a k-tiled accumulator variant would be used instead.
    """
    x = patches.astype(jnp.bfloat16)
    w = wmat.astype(jnp.bfloat16)
    M, K = x.shape
    Kw, Np = w.shape
    assert K == Kw and Np % 128 == 0
    shift = shift.reshape(1, Np).astype(jnp.float32)

    # Only round rows up to a sublane multiple; conv activations usually
    # already satisfy this so there is no big HBM pad copy.
    Mp = _round_up(M, 8)
    if Mp != M:
        x = jnp.pad(x, ((0, Mp - M), (0, 0)))

    # >= 2 grid steps when possible so v7x can shard the parallel axis across
    # both TensorCores; Pallas handles the tail block (no explicit M padding).
    tm = min(tm_max, max(8, _round_up(pl.cdiv(Mp, 2), 8)))
    grid = (pl.cdiv(Mp, tm),)

    out = pl.pallas_call(
        _fused_gemm_bn_relu_kernel,
        out_shape=jax.ShapeDtypeStruct((Mp, Np), out_dtype),
        grid=grid,
        in_specs=[
            pl.BlockSpec((tm, K), lambda i: (i, 0)),
            pl.BlockSpec((K, Np), lambda i: (0, 0)),
            pl.BlockSpec((1, Np), lambda i: (0, 0)),
        ],
        out_specs=pl.BlockSpec((tm, Np), lambda i: (i, 0)),
        compiler_params=pltpu.CompilerParams(
            dimension_semantics=("parallel",),
            vmem_limit_bytes=64 * 1024 * 1024),
    )(x, w, shift)
    return out[:M, :n_valid]


# ------------------------------ im2col (NHWC) ----------------------------------

def _im2col_nhwc(x, kh, kw, stride, pad):
    """x: (N, H, W, C) -> patches (N*Ho*Wo, kh*kw*C) in (kh, kw, Cin) order."""
    N, Hi, Wi, C = x.shape
    xp = jnp.pad(x, ((0, 0), (pad, pad), (pad, pad), (0, 0)))
    Ho = (Hi + 2 * pad - kh) // stride + 1
    Wo = (Wi + 2 * pad - kw) // stride + 1
    cols = [xp[:, i:i + stride * Ho:stride, j:j + stride * Wo:stride, :]
            for i in range(kh) for j in range(kw)]
    patches = jnp.concatenate(cols, axis=-1)
    return patches.reshape(N * Ho * Wo, kh * kw * C), Ho, Wo


# -------------------------------- ConvUnit --------------------------------------

def init_conv_unit(key, input_size, output_size, filter_size, stride, padding,
                   dropout):
    """PyTorch-default-initialized ConvUnit parameters (Conv2d + BatchNorm2d)."""
    k1, k2 = jax.random.split(key)
    fan_in = input_size * filter_size * filter_size
    bound = 1.0 / math.sqrt(fan_in)
    w = jax.random.uniform(k1, (output_size, input_size, filter_size, filter_size),
                           jnp.float32, -bound, bound)
    b = jax.random.uniform(k2, (output_size,), jnp.float32, -bound, bound)
    return dict(
        w=w, b=b,
        gamma=jnp.ones((output_size,), jnp.float32),
        beta=jnp.zeros((output_size,), jnp.float32),
        mean=jnp.zeros((output_size,), jnp.float32),
        var=jnp.ones((output_size,), jnp.float32),
        stride=stride, padding=padding, dropout=dropout)


def prepare_conv_unit(params, eps=1e-5):
    """One-time layout prep: permute the conv weight to the NHWC (kh, kw, Cin)
    im2col order, fold the eval-mode BN scale into it, fold conv bias + BN into
    a single shift, lane-pad the output width to a multiple of 128 and cast the
    MXU operand to bf16."""
    w, b = params["w"], params["b"]
    cout, cin, kh, kw = w.shape
    s = params["gamma"] / jnp.sqrt(params["var"] + eps)       # (cout,)
    shift = (b - params["mean"]) * s + params["beta"]         # (cout,)
    npad = _round_up(cout, 128)
    wmat = jnp.transpose(w, (2, 3, 1, 0)).reshape(kh * kw * cin, cout)
    wmat = wmat * s[None, :]                                   # fold BN scale
    return dict(
        wmat=jnp.pad(wmat, ((0, 0), (0, npad - cout))).astype(jnp.bfloat16),
        shift=jnp.pad(shift, (0, npad - cout)).reshape(1, npad).astype(jnp.float32),
        cout=cout, kh=kh, kw=kw,
        stride=params["stride"], pad=params["padding"])


def conv_unit_forward(prep, x_nchw):
    """ConvUnit forward (eval mode): Conv2d + Dropout2d(=id) + BN(eval) + ReLU.

    Input/output are NCHW to match the PyTorch module; internally NHWC."""
    N = x_nchw.shape[0]
    x = jnp.transpose(x_nchw, (0, 2, 3, 1)).astype(jnp.bfloat16)
    patches, Ho, Wo = _im2col_nhwc(x, prep["kh"], prep["kw"],
                                   prep["stride"], prep["pad"])
    y = fused_conv_gemm(patches, prep["wmat"], prep["shift"], prep["cout"],
                        out_dtype=jnp.float32)
    y = y.reshape(N, Ho, Wo, prep["cout"])
    return jnp.transpose(y, (0, 3, 1, 2))


# ------------------------------ pure-JAX reference ------------------------------

def conv_unit_reference(params, x, eps=1e-5):
    y = lax.conv_general_dilated(
        x, params["w"],
        window_strides=(params["stride"], params["stride"]),
        padding=[(params["padding"], params["padding"])] * 2,
        dimension_numbers=("NCHW", "OIHW", "NCHW"))
    y = y + params["b"][None, :, None, None]
    s = params["gamma"] / jnp.sqrt(params["var"] + eps)
    y = (y - params["mean"][None, :, None, None]) * s[None, :, None, None] \
        + params["beta"][None, :, None, None]
    return jnp.maximum(y, 0.0)


# ------------------------------------ main ---------------------------------------

if __name__ == "__main__":
    key = jax.random.PRNGKey(0)
    bs, cin, hw = 2, 4, 16
    cout, ksz, stride, pad, dropout = 16, 3, 2, 1, 0.4

    k_x, k_p = jax.random.split(key)
    x = jax.random.normal(k_x, (bs, cin, hw, hw), jnp.float32)

    params = init_conv_unit(k_p, cin, cout, ksz, stride, pad, dropout)
    prep = prepare_conv_unit(params)

    fwd = jax.jit(lambda img: conv_unit_forward(prep, img))
    y = fwd(x)
    jax.block_until_ready(y)

    ho = (hw + 2 * pad - ksz) // stride + 1
    assert y.shape == (bs, cout, ho, ho), y.shape
    assert bool(jnp.all(jnp.isfinite(y)))

    # Numerics check against a pure-JAX f32 reference (bf16 MXU tolerance).
    ref = conv_unit_reference(params, x)
    max_err = float(jnp.max(jnp.abs(y - ref)))
    assert max_err < 3e-2, max_err

    print("KERNEL_OK")
</pallas_src>

<mosaic_0001>
module attributes {stable_mosaic.version = 11 : i64} {
  func.func @_fused_gemm_bn_relu_kernel(%arg0: i32, %arg1: memref<64x36xbf16, #tpu.memory_space<vmem>>, %arg2: memref<36x128xbf16, #tpu.memory_space<vmem>>, %arg3: memref<1x128xf32, #tpu.memory_space<vmem>>, %arg4: memref<64x128xf32, #tpu.memory_space<vmem>>) attributes {dimension_semantics = [#tpu.dimension_semantics<parallel>], iteration_bounds = array<i64: 2>, scalar_prefetch = 0 : i64, scratch_operands = 0 : i64, tpu.core_type = #tpu.core_type<tc>, window_params = [{transform_indices = @transform_0, window_bounds = array<i64: 64, 36>}, {pipeline_mode = #tpu.pipeline_mode<synchronous>, transform_indices = @transform_1, window_bounds = array<i64: 36, 128>}, {pipeline_mode = #tpu.pipeline_mode<synchronous>, transform_indices = @transform_2, window_bounds = array<i64: 1, 128>}, {transform_indices = @transform_3, window_bounds = array<i64: 64, 128>}]} {
    %c0 = arith.constant 0 : index
    %c0_0 = arith.constant 0 : index
    %0 = vector.load %arg1[%c0, %c0_0] : memref<64x36xbf16, #tpu.memory_space<vmem>>, vector<64x36xbf16>
    %c0_1 = arith.constant 0 : index
    %c0_2 = arith.constant 0 : index
    %1 = vector.load %arg2[%c0_1, %c0_2] : memref<36x128xbf16, #tpu.memory_space<vmem>>, vector<36x128xbf16>
    %cst = arith.constant dense<0.000000e+00> : vector<64x128xf32>
    %2 = tpu.matmul %0, %1, %cst {dimension_numbers = #tpu.dot_dimension_numbers<[1], [0], [0], [1], [0, 0, 1, 1], [], []>} : vector<64x36xbf16>, vector<36x128xbf16>, vector<64x128xf32> -> vector<64x128xf32>
    %c0_3 = arith.constant 0 : index
    %c0_4 = arith.constant 0 : index
    %3 = vector.load %arg3[%c0_3, %c0_4] : memref<1x128xf32, #tpu.memory_space<vmem>>, vector<1x128xf32>
    %4 = vector.broadcast %3 : vector<1x128xf32> to vector<64x128xf32>
    %5 = arith.addf %2, %4 : vector<64x128xf32>
    %cst_5 = arith.constant 0.000000e+00 : f32
    %6 = vector.broadcast %cst_5 : f32 to vector<64x128xf32>
    %7 = arith.maximumf %5, %6 : vector<64x128xf32>
    %c0_6 = arith.constant 0 : index
    %c0_7 = arith.constant 0 : index
    %8 = vector.load %arg4[%c0_6, %c0_7] : memref<64x128xf32, #tpu.memory_space<vmem>>, vector<64x128xf32>
    tpu.vector_store %arg4[%c0_6, %c0_7], %7 {strides = array<i32>} : memref<64x128xf32, #tpu.memory_space<vmem>>, vector<64x128xf32>,
    return
  }
  func.func @transform_0(%arg0: i32) -> (i32, i32) {
    %c0_i32 = arith.constant 0 : i32
    %c0_i32_0 = arith.constant 0 : i32
    return %arg0, %c0_i32 : i32, i32
  }
  func.func @transform_1(%arg0: i32) -> (i32, i32) {
    %c0_i32 = arith.constant 0 : i32
    %c0_i32_0 = arith.constant 0 : i32
    %c0_i32_1 = arith.constant 0 : i32
    return %c0_i32, %c0_i32_0 : i32, i32
  }
  func.func @transform_2(%arg0: i32) -> (i32, i32) {
    %c0_i32 = arith.constant 0 : i32
    %c0_i32_0 = arith.constant 0 : i32
    %c0_i32_1 = arith.constant 0 : i32
    return %c0_i32, %c0_i32_0 : i32, i32
  }
  func.func @transform_3(%arg0: i32) -> (i32, i32) {
    %c0_i32 = arith.constant 0 : i32
    %c0_i32_0 = arith.constant 0 : i32
    return %arg0, %c0_i32 : i32, i32
  }
}

</mosaic_0001>

<llo_original>
// kernel: _lambda_.1
$region0: #{_lambda_.1}
  #allocation0 [shape = 'u32[]', space=smem, size = 0x4, offset = 0x4, fixed_abs, tag = 'smem constant byte address 0x4 - core index']
  #allocation1 [shape = 'u32[144,128]{1,0:T(1,128)}', space=vmem, size = 0x12000, scoped, tag = 'internal scratch']
  %s0 = inlined_call_operand.hbm [shape: bf16[128,36], index: 0, kind: input, shape index: {}]
  %s1 = inlined_call_operand.hbm [shape: bf16[36,128], index: 1, kind: input, shape index: {}]
  %s2 = inlined_call_operand.hbm [shape: f32[1,128], index: 2, kind: input, shape index: {}]
  %s3 = inlined_call_operand.hbm [shape: f32[128,128], index: 3, kind: output, shape index: {}]
  %s4 = sld [smem:[#allocation0]]
  $region57: #{_lambda_.1} parent=0
    _
  %s6 = ssub.s32 1, %s4
  %s7 = scalar_select 0, %s6, %s4
  $region1: #{_lambda_.1} parent=0
    #allocation2 [shape = 'u8[32768]{0}', space=vmem, size = 0x8000, scoped, tag = 'input window, operand 0']
    #allocation3 [shape = 's32[2]{0}', space=sflag, size = 0x8, scoped, tag = 'scoped memory for _lambda_.1']
    #allocation4 [shape = 's32[2]{0}', space=sflag, size = 0x8, scoped, tag = 'scoped memory for _lambda_.1']
    #allocation5 [shape = 'u8[10240]{0}', space=vmem, size = 0x2800, scoped, tag = 'input window, operand 1, single buffered']
    #allocation6 [shape = 's32[1]{0}', space=sflag, size = 0x4, scoped, tag = 'scoped memory for _lambda_.1']
    #allocation7 [shape = 'u8[512]{0}', space=vmem, size = 0x400, scoped, tag = 'input window, operand 2, single buffered']
    #allocation8 [shape = 'u8[65536]{0}', space=vmem, size = 0x10000, scoped, tag = 'output window, operand 0']
    %8 = vsyncpa [#allocation3], 0
    %s9 = scalar_lea.sflag [#allocation3], 1
    %10 = vsyncpa %s9, 0
    %11 = vsyncpa [#allocation6], 0
    %12 = vsyncpa [#allocation4], 0
    %s13 = scalar_lea.sflag [#allocation4], 1
    %14 = vsyncpa %s13, 0
    loop: start=0, step=1, limit=4
    $region2: #{_lambda_.1} parent=1 // loop_pre_header
      _
    $region3: #{_lambda_.1} parent=1 // loop_header
      %s16 = sphi 0, %s20
      %p17 = scmp.ge.s32.totalorder %s16, 4
      %s26 = sphi 0, %s28
      %s29 = sphi 0, %s26
      %s30 = sphi 0, %s29
      %s46 = sphi 0, %s30
      %s50 = sphi 0, %s50
      %s52 = sphi 0, %s50
      %s53 = sphi 0, %s52
      %s67 = sphi 0, %s53
      %s71 = sphi 0, %s71
      %s73 = sphi 0, %s71
      %s74 = sphi 0, %s73
      %s88 = sphi 0, %s74
      %s94 = sphi 0, %s96
      %s97 = sphi 0, %s94
      %s98 = sphi 0, %s97
      %s114 = sphi 0, %s98
    $region4: #{_lambda_.1} parent=1 // loop_header_branch
      %19 = sbr.rel (%p17) target = $region8
    $region5: #{_lambda_.1} parent=1 // loop_body
      %s21 = ssub.s32 %s16, 1
      %s22 = ssub.s32 %s16, 2
      %s23 = sadd.s32 %s16, 1
      %s24 = ssub.s32 %s16, %s23
      %p25 = scmp.eq.s32.totalorder %s24, 0
      %s27 = sadd.s32 %s26, 1
      %s28 = scalar_select %p25, %s26, %s27
      %p31 = pneg %p25
      %p32 = scmp.eq.s32.totalorder %s16, 1
      %p33 = por %p31, %p32
      %p34 = scmp.ne.s32.totalorder %s26, %s29
      %p35 = scmp.eq.s32.totalorder %s16, 0
      %p36 = por %p34, %p35
      %p37 = scmp.ne.s32.totalorder %s26, %s29
      %p38 = scmp.eq.s32.totalorder %s21, 1
      %p39 = por %p37, %p38
      %p40 = scmp.ne.s32.totalorder %s29, %s30
      %p41 = scmp.eq.s32.totalorder %s21, 0
      %p42 = por %p40, %p41
      %p43 = scmp.ne.s32.totalorder %s29, %s30
      %p44 = scmp.eq.s32.totalorder %s22, 1
      %p45 = por %p43, %p44
      %p47 = scmp.ne.s32.totalorder %s30, %s46
      %p48 = scmp.eq.s32.totalorder %s22, 0
      %p49 = por %p47, %p48
      %s51 = sadd.s32 %s50, 1
      %p54 = scmp.eq.s32.totalorder %s16, 1
      %p55 = scmp.ne.s32.totalorder %s50, %s52
      %p56 = scmp.eq.s32.totalorder %s16, 0
      %p57 = por %p55, %p56
      %p58 = scmp.ne.s32.totalorder %s50, %s52
      %p59 = scmp.eq.s32.totalorder %s21, 1
      %p60 = por %p58, %p59
      %p61 = scmp.ne.s32.totalorder %s52, %s53
      %p62 = scmp.eq.s32.totalorder %s21, 0
      %p63 = por %p61, %p62
      %p64 = scmp.ne.s32.totalorder %s52, %s53
      %p65 = scmp.eq.s32.totalorder %s22, 1
      %p66 = por %p64, %p65
      %p68 = scmp.ne.s32.totalorder %s53, %s67
      %p69 = scmp.eq.s32.totalorder %s22, 0
      %p70 = por %p68, %p69
      %s72 = sadd.s32 %s71, 1
      %p75 = scmp.eq.s32.totalorder %s16, 1
      %p76 = scmp.ne.s32.totalorder %s71, %s73
      %p77 = scmp.eq.s32.totalorder %s16, 0
      %p78 = por %p76, %p77
      %p79 = scmp.ne.s32.totalorder %s71, %s73
      %p80 = scmp.eq.s32.totalorder %s21, 1
      %p81 = por %p79, %p80
      %p82 = scmp.ne.s32.totalorder %s73, %s74
      %p83 = scmp.eq.s32.totalorder %s21, 0
      %p84 = por %p82, %p83
      %p85 = scmp.ne.s32.totalorder %s73, %s74
      %p86 = scmp.eq.s32.totalorder %s22, 1
      %p87 = por %p85, %p86
      %p89 = scmp.ne.s32.totalorder %s74, %s88
      %p90 = scmp.eq.s32.totalorder %s22, 0
      %p91 = por %p89, %p90
      %s92 = ssub.s32 %s16, %s23
      %p93 = scmp.eq.s32.totalorder %s92, 0
      %s95 = sadd.s32 %s94, 1
      %s96 = scalar_select %p93, %s94, %s95
      %p99 = pneg %p93
      %p100 = scmp.eq.s32.totalorder %s16, 1
      %p101 = por %p99, %p100
      %p102 = scmp.ne.s32.totalorder %s94, %s97
      %p103 = scmp.eq.s32.totalorder %s16, 0
      %p104 = por %p102, %p103
      %p105 = scmp.ne.s32.totalorder %s94, %s97
      %p106 = scmp.eq.s32.totalorder %s21, 1
      %p107 = por %p105, %p106
      %p108 = scmp.ne.s32.totalorder %s97, %s98
      %p109 = scmp.eq.s32.totalorder %s21, 0
      %p110 = por %p108, %p109
      %p111 = scmp.ne.s32.totalorder %s97, %s98
      %p112 = scmp.eq.s32.totalorder %s22, 1
      %p113 = por %p111, %p112
      %p115 = scmp.ne.s32.totalorder %s98, %s114
      %p116 = scmp.eq.s32.totalorder %s22, 0
      %p117 = por %p115, %p116
      %p118 = scmp.le.s32.totalorder 1, %s16
      %p119 = scmp.lt.s32.totalorder %s16, 3
      %p120 = pnand %p118, %p119
      %p121 = pneg %p120
      // Predicated region
      $region9: #{_lambda_.1} parent=5 // pred_check
        _
      $region10: #{_lambda_.1} parent=5 // pred_check_branch
        %123 = sbr.rel (%p120) target = $region12
      $region11: #{_lambda_.1} parent=5 // pred_region
        %s124 = ssub.s32 %s16, 1
        // Predicated region
        $region13: #{_lambda_.1} parent=11 // pred_check
          %p125 = pneg %p63
        $region14: #{_lambda_.1} parent=11 // pred_check_branch
          %127 = sbr.rel (%p125) target = $region16
        $region15: #{_lambda_.1} parent=11 // pred_region
          %s129 = ssub.s32 320, 320
          %130 = vsyncadd [#allocation6], %s129
          %s131 = sshll.u32 [#allocation5], 4
          %s132 = int_to_ptr.vmem [resolvable:$true] %s131
          %137 = dma.hbm_to_vmem [thread:$0]  %s1, 320, %s132, [#allocation6], 64, 64, 4
        $region16: #{_lambda_.1} parent=11 // pred_fallthru
          _
        // Predicated region
        $region17: #{_lambda_.1} parent=11 // pred_check
          %p138 = pneg %p84
        $region18: #{_lambda_.1} parent=11 // pred_check_branch
          %140 = sbr.rel (%p138) target = $region20
        $region19: #{_lambda_.1} parent=11 // pred_region
          %s142 = ssub.s32 16, 16
          %143 = vsyncadd [#allocation6], %s142
          %s145 = sshll.u32 [#allocation7], 4
          %s146 = int_to_ptr.vmem [resolvable:$true] %s145
          %148 = dma.hbm_to_vmem [thread:$0]  %s2, 16, %s146, [#allocation6]
        $region20: #{_lambda_.1} parent=11 // pred_fallthru
          _
      $region12: #{_lambda_.1} parent=5 // pred_fallthru
        _
      %p149 = scmp.lt.s32.totalorder %s16, 2
      // Predicated region
      $region21: #{_lambda_.1} parent=5 // pred_check
        %p150 = pneg %p149
      $region22: #{_lambda_.1} parent=5 // pred_check_branch
        %152 = sbr.rel (%p150) target = $region24
      $region23: #{_lambda_.1} parent=5 // pred_region
        // Predicated region
        $region25: #{_lambda_.1} parent=23 // pred_check
          %p153 = pneg %p36
        $region26: #{_lambda_.1} parent=23 // pred_check_branch
          %155 = sbr.rel (%p153) target = $region28
        $region27: #{_lambda_.1} parent=23 // pred_region
          %s156 = sand.u32 %s26, 1
          %s157 = scalar_lea.sflag [#allocation3], %s156
          %s158 = sand.u32 %s26, 1
          %s159 = smul.addr %s158, 32
          %s160 = scalar_lea.vmem [#allocation2], %s159
          %s161 = smul.u32 8, %s16
          %s163 = ssub.s32 512, 512
          %164 = vsyncadd %s157, %s163
          %s165 = smul.addr %s161, 64
          %s166 = scalar_lea.hbm %s0, %s165
          %s167 = sshll.u32 %s160, 4
          %s168 = int_to_ptr.vmem [resolvable:$true] %s167
          %173 = dma.hbm_to_vmem [thread:$0]  %s166, 512, %s168, %s157, 64, 64, 4
        $region28: #{_lambda_.1} parent=23 // pred_fallthru
          _
      $region24: #{_lambda_.1} parent=5 // pred_fallthru
        _
      %p174 = scmp.le.s32.totalorder 1, %s16
      %p175 = scmp.lt.s32.totalorder %s16, 3
      %p176 = pnand %p174, %p175
      %p177 = pneg %p176
      // Predicated region
      $region29: #{_lambda_.1} parent=5 // pred_check
        _
      $region30: #{_lambda_.1} parent=5 // pred_check_branch
        %179 = sbr.rel (%p176) target = $region32
      $region31: #{_lambda_.1} parent=5 // pred_region
        %s180 = ssub.s32 %s16, 1
        %s181 = sand.u32 %s29, 1
        %s182 = scalar_lea.sflag [#allocation3], %s181
        %s183 = sand.u32 %s29, 1
        %s184 = smul.addr %s183, 32
        %s185 = scalar_lea.vmem [#allocation2], %s184
        // Predicated region
        $region33: #{_lambda_.1} parent=31 // pred_check
          %p186 = pneg %p42
        $region34: #{_lambda_.1} parent=31 // pred_check_branch
          %188 = sbr.rel (%p186) target = $region36
        $region35: #{_lambda_.1} parent=31 // pred_region
          %189 = dma.done %s182, 512
        $region36: #{_lambda_.1} parent=31 // pred_fallthru
          _
        // Predicated region
        $region37: #{_lambda_.1} parent=31 // pred_check
          %p190 = pneg %p63
        $region38: #{_lambda_.1} parent=31 // pred_check_branch
          %192 = sbr.rel (%p190) target = $region40
        $region39: #{_lambda_.1} parent=31 // pred_region
          %193 = dma.done [#allocation6], 320
        $region40: #{_lambda_.1} parent=31 // pred_fallthru
          _
        // Predicated region
        $region41: #{_lambda_.1} parent=31 // pred_check
          %p194 = pneg %p84
        $region42: #{_lambda_.1} parent=31 // pred_check_branch
          %196 = sbr.rel (%p194) target = $region44
        $region43: #{_lambda_.1} parent=31 // pred_region
          %197 = dma.done [#allocation6], 16
        $region44: #{_lambda_.1} parent=31 // pred_fallthru
          _
        %s198 = sand.u32 %s29, 1
        %s199 = scalar_lea.sflag [#allocation3], %s198
        %s200 = sand.u32 %s29, 1
        %s201 = smul.addr %s200, 32
        %s202 = scalar_lea.vmem [#allocation2], %s201
        %p203 = pneg %p42
        %p204 = pneg %p39
        %p205 = pneg %p63
        %p206 = pneg %p60
        %p207 = pneg %p84
        %p208 = pneg %p81
        %p209 = pneg %p110
        %p210 = pneg %p107
        %s211 = sand.u32 %s97, 1
        %s212 = scalar_lea.sflag [#allocation4], %s211
        %s213 = sand.u32 %s97, 1
        %s214 = smul.addr %s213, 64
        %s215 = scalar_lea.vmem [#allocation8], %s214
        %s216 = smul.u32 8, %s21
        %s217 = smul.u32 8, %s21
        %v219 = vld [vmem:[%s185] sm:$0xf]
        %v220 = vld [vmem:[%s185 + $0x4] sm:$0xf]
        %v221 = vld [vmem:[%s185 + $0x8] sm:$0xf]
        %v222 = vld [vmem:[%s185 + $0xc] sm:$0xf]
        %v223 = vld [vmem:[%s185 + $0x10] sm:$0xf]
        %v224 = vld [vmem:[%s185 + $0x14] sm:$0xf]
        %v225 = vld [vmem:[%s185 + $0x18] sm:$0xf]
        %v226 = vld [vmem:[%s185 + $0x1c] sm:$0xf]
        %v227 = vld [vmem:[#allocation5] sm:$0xf]
        %v228 = vld [vmem:[#allocation5 + $0x4] sm:$0xf]
        %v229 = vld [vmem:[#allocation5 + $0x8] sm:$0xf]
        %v230 = vld [vmem:[#allocation5 + $0xc] sm:$0xf]
        %v231 = vld [vmem:[#allocation5 + $0x10] sm:$0x3]
        %v232 = vld [vmem:[#allocation7] sm:$0x1]
        %v234 = vlaneseq
        %v235 = vshrl.u32 %v234, 7
        %v236 = vsub.s32 0, %v235
        %v237 = vrot.slane %v232, %v236
        %v247 = vunpack.c.l.b16 %v219
        %v248 = vunpack.c.l.b16 %v220
        %v249 = vunpack.c.l.b16 %v221
        %v250 = vunpack.c.l.b16 %v222
        %v251 = vunpack.c.l.b16 %v223
        %v252 = vunpack.c.l.b16 %v224
        %v253 = vunpack.c.l.b16 %v225
        %v254 = vunpack.c.l.b16 %v226
        %v255 = vpack.c.b16 %v248, %v247
        %v256 = vpack.c.b16 %v250, %v249
        %v257 = vpack.c.b16 %v252, %v251
        %v258 = vpack.c.b16 %v254, %v253
        %v264 = vunpack.c.l.b16 %v227
        %v265 = vunpack.c.l.b16 %v228
        %v266 = vunpack.c.l.b16 %v229
        %v267 = vunpack.c.l.b16 %v230
        %v268 = vunpack.c.l.b16 %v231
        %v269 = vpack.c.b16 %v265, %v264
        %v270 = vpack.c.b16 %v267, %v266
        %v271 = vpack.c.b16 %v268, %v268
        %vm274 = vcmask 293888
        %v276 = vsel %vm274, %v255, 0
        %v279 = vsel %vm274, %v256, 0
        %v282 = vsel %vm274, %v257, 0
        %v285 = vsel %vm274, %v258, 0
        %vm287 = vcmask 1041408
        %v289 = vsel %vm287, %v271, 0
        %291 = vmatprep.subr.bf16.mxu0 0
        %292 = vmatpush1.bf16.msra.mxu0 %v269
        %293 = vmatprep.subr.bf16.mxu0 0
        %294 = vmatpush1.bf16.msra.mxu0 %v270
        %295 = vmatprep.subr.bf16.mxu0 0
        %296 = vmatpush1.bf16.msra.mxu0 %v289
        %297 = vmatprep.subr.bf16.mxu0 0
        %298 = vmatpush1.bf16.msra.mxu0 0
        %299 = vmatprep.subr.bf16.mxu0 0
        %300 = vmatpush1.bf16.msra.mxu0 0
        %301 = vmatprep.subr.bf16.mxu0 0
        %302 = vmatpush1.bf16.msra.mxu0 0
        %303 = vmatprep.subr.bf16.mxu0 0
        %304 = vmatpush1.bf16.msra.mxu0 0
        %305 = vmatprep.subr.bf16.mxu0 0
        %306 = vmatpush1.bf16.msra.mxu0 0
        %307 = vmatprep.subr.bf16.mxu0 0
        %308 = vmatpush1.bf16.msra.mxu0 0
        %309 = vmatprep.subr.bf16.mxu0 0
        %310 = vmatpush1.bf16.msra.mxu0 0
        %311 = vmatprep.subr.bf16.mxu0 0
        %312 = vmatpush1.bf16.msra.mxu0 0
        %313 = vmatprep.subr.bf16.mxu0 0
        %314 = vmatpush1.bf16.msra.mxu0 0
        %315 = vmatprep.subr.bf16.mxu0 0
        %316 = vmatpush1.bf16.msra.mxu0 0
        %317 = vmatprep.subr.bf16.mxu0 0
        %318 = vmatpush1.bf16.msra.mxu0 0
        %319 = vmatprep.subr.bf16.mxu0 0
        %320 = vmatpush1.bf16.msra.mxu0 0
        %321 = vmatprep.subr.bf16.mxu0 0
        %322 = vmatpush1.bf16.msra.mxu0 0
        %323 = vmatprep.mubr.bf16.mxu0 0
        %324 = vmatmul.mubr.bf16.gmra.mrb[0].mxu0 %v276
        %v325 = vpop.f32.mrb[0].mxu0
        %v326 = vadd.f32 %v237, %v325
        %v327 = vpop.f32.mrb[0].mxu0
        %v328 = vpop.f32.mrb[0].mxu0
        %v329 = vadd.f32 %v237, %v328
        %v330 = vpop.f32.mrb[0].mxu0
        %331 = vmatprep.mubr.bf16.mxu0 0
        %332 = vmatmul.mubr.bf16.gmra.mrb[0].mxu0 %v279
        %v333 = vpop.f32.mrb[0].mxu0
        %v334 = vadd.f32 %v237, %v333
        %v335 = vpop.f32.mrb[0].mxu0
        %v336 = vpop.f32.mrb[0].mxu0
        %v337 = vadd.f32 %v237, %v336
        %v338 = vpop.f32.mrb[0].mxu0
        %339 = vmatprep.mubr.bf16.mxu0 0
        %340 = vmatmul.mubr.bf16.gmra.mrb[0].mxu0 %v282
        %v341 = vpop.f32.mrb[0].mxu0
        %v342 = vadd.f32 %v237, %v341
        %v343 = vpop.f32.mrb[0].mxu0
        %v344 = vpop.f32.mrb[0].mxu0
        %v345 = vadd.f32 %v237, %v344
        %v346 = vpop.f32.mrb[0].mxu0
        %347 = vmatprep.mubr.bf16.mxu0 0
        %348 = vmatmul.mubr.bf16.gmra.mrb[0].mxu0 %v285
        %v349 = vpop.f32.mrb[0].mxu0
        %v350 = vadd.f32 %v237, %v349
        %v351 = vpop.f32.mrb[0].mxu0
        %v352 = vpop.f32.mrb[0].mxu0
        %v353 = vadd.f32 %v237, %v352
        %v354 = vpop.f32.mrb[0].mxu0
        %355 = vdwg.mxu0
        %v356 = vmax.f32 %v326, 0.0
        %v357 = vmax.f32 %v329, 0.0
        %v358 = vmax.f32 %v334, 0.0
        %v359 = vmax.f32 %v337, 0.0
        %v360 = vmax.f32 %v342, 0.0
        %v361 = vmax.f32 %v345, 0.0
        %v362 = vmax.f32 %v350, 0.0
        %v363 = vmax.f32 %v353, 0.0
        %364 = vst [vmem:[%s215] sm:$0xff] %v356
        %365 = vst [vmem:[%s215 + $0x8] sm:$0xff] %v357
        %366 = vst [vmem:[%s215 + $0x10] sm:$0xff] %v358
        %367 = vst [vmem:[%s215 + $0x18] sm:$0xff] %v359
        %368 = vst [vmem:[%s215 + $0x20] sm:$0xff] %v360
        %369 = vst [vmem:[%s215 + $0x28] sm:$0xff] %v361
        %370 = vst [vmem:[%s215 + $0x30] sm:$0xff] %v362
        %371 = vst [vmem:[%s215 + $0x38] sm:$0xff] %v363
        %s372 = sand.u32 %s97, 1
        %s373 = scalar_lea.sflag [#allocation4], %s372
        %s374 = sand.u32 %s97, 1
        %s375 = smul.addr %s374, 64
        %s376 = scalar_lea.vmem [#allocation8], %s375
        // Predicated region
        $region45: #{_lambda_.1} parent=31 // pred_check
          %p377 = pneg %p107
        $region46: #{_lambda_.1} parent=31 // pred_check_branch
          %379 = sbr.rel (%p377) target = $region48
        $region47: #{_lambda_.1} parent=31 // pred_region
          %s380 = smul.u32 8, %s21
          %s382 = ssub.s32 1024, 1024
          %383 = vsyncadd %s373, %s382
          %s384 = smul.addr %s380, 128
          %s385 = scalar_lea.hbm %s3, %s384
          %s386 = sshll.u32 %s376, 4
          %s387 = int_to_ptr.vmem [resolvable:$true] %s386
          %392 = dma.vmem_to_hbm [thread:$0]  %s387, 1024, %s385, %s373, 128, 128, 8
        $region48: #{_lambda_.1} parent=31 // pred_fallthru
          _
      $region32: #{_lambda_.1} parent=5 // pred_fallthru
        _
      %p393 = scmp.le.s32.totalorder 2, %s16
      // Predicated region
      $region49: #{_lambda_.1} parent=5 // pred_check
        %p394 = pneg %p393
      $region50: #{_lambda_.1} parent=5 // pred_check_branch
        %396 = sbr.rel (%p394) target = $region52
      $region51: #{_lambda_.1} parent=5 // pred_region
        %s397 = ssub.s32 %s16, 2
        // Predicated region
        $region53: #{_lambda_.1} parent=51 // pred_check
          %p398 = pneg %p113
        $region54: #{_lambda_.1} parent=51 // pred_check_branch
          %400 = sbr.rel (%p398) target = $region56
        $region55: #{_lambda_.1} parent=51 // pred_region
          %s401 = sand.u32 %s98, 1
          %s402 = scalar_lea.sflag [#allocation4], %s401
          %s403 = sand.u32 %s98, 1
          %s404 = smul.addr %s403, 64
          %s405 = scalar_lea.vmem [#allocation8], %s404
          %406 = dma.done %s402, 1024
        $region56: #{_lambda_.1} parent=51 // pred_fallthru
          _
      $region52: #{_lambda_.1} parent=5 // pred_fallthru
        _
    $region6: #{_lambda_.1} parent=1 // loop_footer
      %s20 = sadd.s32 1, %s16
    $region7: #{_lambda_.1} parent=1 // loop_footer_branch
      %15 = sbr.rel target = $region3
    $region8: #{_lambda_.1} parent=1 // loop_exit
      _
    %407 = vsyncpa [#allocation3], 1
    %s408 = scalar_lea.sflag [#allocation3], 1
    %409 = vsyncpa %s408, 1
    %410 = vsyncpa [#allocation6], 1
    %411 = vsyncpa [#allocation4], 1
    %s412 = scalar_lea.sflag [#allocation4], 1
    %413 = vsyncpa %s412, 1

</llo_original>
